<compile_context>
chip_gen: v7x
topology: tpu7x:2x2x1
jax: 0.10.0
libtpu: 0.0.40
codegen_flags: <defaults>
</compile_context>

<pallas_src>
import functools

import jax
import jax.numpy as jnp
from jax.experimental import pallas as pl
from jax.experimental.pallas import tpu as pltpu


def _round_up(x, m):
    return ((x + m - 1) // m) * m


def _rel_pos_emb_kernel(pos_ref, table_ref, out_ref, *, maxlen):
    # pos_ref:   (tm, 1)   int32   -- relative positions (unclamped)
    # table_ref: (V,  Dp)  float   -- embedding table (lane-padded), V = 2*maxlen
    # out_ref:   (tm, Dp)  float
    idx = jnp.clip(pos_ref[...], -maxlen, maxlen - 1) + maxlen   # (tm, 1) in [0, V)
    tm = out_ref.shape[0]
    V = table_ref.shape[0]
    lane = jax.lax.broadcasted_iota(jnp.int32, (tm, V), 1)
    # 0/1 one-hot is exact in any float dtype; dtype follows the table so a
    # bf16 table uses the fast bf16 MXU path on v6e/v7x.
    onehot = (idx == lane).astype(table_ref.dtype)               # (tm, V)
    out_ref[...] = jnp.dot(
        onehot, table_ref[...], preferred_element_type=jnp.float32
    ).astype(out_ref.dtype)


def _gather_embedding(pos_flat, table, *, maxlen, tm=256):
    """pos_flat: (N, 1) int32, table: (V, Dp) with Dp % 128 == 0 -> (N, Dp)."""
    N = pos_flat.shape[0]
    V, Dp = table.shape
    itemsize = jnp.dtype(table.dtype).itemsize

    # Row tile: multiple of 8, no bigger than the (padded) problem.
    tm = _round_up(max(int(tm), 8), 8)
    tm_eff = min(tm, _round_up(N, 8))
    Np = _round_up(N, tm_eff)
    if Np != N:
        # Padded rows gather row `maxlen` (valid index); sliced away below.
        pos_flat = jnp.pad(pos_flat, ((0, Np - N), (0, 0)))
    grid = (Np // tm_eff,)

    # VMEM budget: resident table (up to 2 pipeline buffers), idx/out tiles
    # (double buffered), plus the (tm, V) one-hot intermediate.  Cap at 64 MiB.
    vmem_bytes = (
        2 * V * Dp * itemsize
        + 2 * tm_eff * 1 * 4
        + 2 * tm_eff * Dp * itemsize
        + tm_eff * V * itemsize
    )
    vmem_limit = int(min(max(2 * vmem_bytes, 32 * 1024 * 1024),
                         64 * 1024 * 1024))

    cost = pl.CostEstimate(
        flops=2 * Np * V * Dp,
        transcendentals=0,
        bytes_accessed=Np * 4 + V * Dp * itemsize + Np * Dp * itemsize,
    )

    kernel = functools.partial(_rel_pos_emb_kernel, maxlen=maxlen)
    out = pl.pallas_call(
        kernel,
        out_shape=jax.ShapeDtypeStruct((Np, Dp), table.dtype),
        grid=grid,
        in_specs=[
            pl.BlockSpec((tm_eff, 1), lambda i: (i, 0)),   # index tile
            pl.BlockSpec((V, Dp), lambda i: (0, 0)),       # full table, resident
        ],
        out_specs=pl.BlockSpec((tm_eff, Dp), lambda i: (i, 0)),
        compiler_params=pltpu.CompilerParams(
            dimension_semantics=("parallel",),
            vmem_limit_bytes=vmem_limit,
        ),
        cost_estimate=cost,
    )(pos_flat, table)
    return out[:N]


def relative_positional_encoding(pos_seq, pe_k, pe_v=None, *, maxlen, tm=256):
    """JAX/Pallas equivalent of RelativePositionalEncoding.forward.

    pos_seq: integer array of any shape.
    pe_k, pe_v: (2*maxlen, d_model) embedding tables (pe_v optional).
    Returns (emb_k, emb_v_or_None) with shape pos_seq.shape + (d_model,).
    """
    orig_shape = pos_seq.shape
    d_model = pe_k.shape[1]
    flat = pos_seq.reshape(-1, 1).astype(jnp.int32)

    # Fuse the K and V gathers: one table, one kernel launch, one one-hot.
    table = pe_k if pe_v is None else jnp.concatenate([pe_k, pe_v], axis=-1)
    D = table.shape[1]

    # Lane-dense output: pad the feature axis to a multiple of 128.
    Dp = max(128, _round_up(D, 128))
    if Dp != D:
        table = jnp.pad(table, ((0, 0), (0, Dp - D)))

    out = _gather_embedding(flat, table, maxlen=maxlen, tm=tm)

    out_k = out[:, :d_model].reshape(orig_shape + (d_model,))
    if pe_v is not None:
        out_v = out[:, d_model:2 * d_model].reshape(orig_shape + (d_model,))
        return out_k, out_v
    return out_k, None


if __name__ == "__main__":
    d_model = 32
    maxlen = 16          # -> embedding tables of shape (2*maxlen, d_model) = (32, 32)
    L = 8                # pos_seq is an (L, L) relative-position matrix

    key = jax.random.PRNGKey(0)
    k_k, k_v, k_pos = jax.random.split(key, 3)

    pe_k = jax.random.normal(k_k, (2 * maxlen, d_model), dtype=jnp.float32)
    pe_v = jax.random.normal(k_v, (2 * maxlen, d_model), dtype=jnp.float32)

    # Relative positions, including values outside [-maxlen, maxlen-1] to
    # exercise the clamp.
    pos_seq = jax.random.randint(k_pos, (L, L), -20, 21, dtype=jnp.int32)

    # Reference.
    clamped = jnp.clip(pos_seq, -maxlen, maxlen - 1) + maxlen
    ref_k = pe_k[clamped]
    ref_v = pe_v[clamped]

    # embed_v=True path (fused K/V gather in a single kernel).
    out_k, out_v = relative_positional_encoding(pos_seq, pe_k, pe_v, maxlen=maxlen)
    out_k, out_v = jax.block_until_ready((out_k, out_v))
    assert out_k.shape == (L, L, d_model)
    assert out_v.shape == (L, L, d_model)
    assert jnp.allclose(out_k, ref_k, atol=1e-6), "K mismatch vs reference"
    assert jnp.allclose(out_v, ref_v, atol=1e-6), "V mismatch vs reference"

    # embed_v=False path.
    out_k2, none_v = relative_positional_encoding(pos_seq, pe_k, None, maxlen=maxlen)
    out_k2 = jax.block_until_ready(out_k2)
    assert none_v is None
    assert jnp.allclose(out_k2, ref_k, atol=1e-6), "K mismatch vs reference (no V)"

    print("KERNEL_OK")
</pallas_src>

<mosaic_0001>
module attributes {stable_mosaic.version = 11 : i64} {
  func.func @_rel_pos_emb_kernel(%arg0: i32, %arg1: memref<64x1xi32, #tpu.memory_space<vmem>>, %arg2: memref<32x128xf32, #tpu.memory_space<vmem>>, %arg3: memref<64x128xf32, #tpu.memory_space<vmem>>) attributes {dimension_semantics = [#tpu.dimension_semantics<parallel>], iteration_bounds = array<i64: 1>, scalar_prefetch = 0 : i64, scratch_operands = 0 : i64, tpu.core_type = #tpu.core_type<tc>, window_params = [{transform_indices = @transform_0, window_bounds = array<i64: 64, 1>}, {pipeline_mode = #tpu.pipeline_mode<synchronous>, transform_indices = @transform_1, window_bounds = array<i64: 32, 128>}, {transform_indices = @transform_2, window_bounds = array<i64: 64, 128>}]} {
    %c0 = arith.constant 0 : index
    %c0_0 = arith.constant 0 : index
    %0 = vector.load %arg1[%c0, %c0_0] : memref<64x1xi32, #tpu.memory_space<vmem>>, vector<64x1xi32>
    %c-16_i32 = arith.constant -16 : i32
    %c15_i32 = arith.constant 15 : i32
    %1 = vector.broadcast %c-16_i32 : i32 to vector<64x1xi32>
    %2 = arith.maxsi %1, %0 : vector<64x1xi32>
    %3 = vector.broadcast %c15_i32 : i32 to vector<64x1xi32>
    %4 = arith.minsi %3, %2 : vector<64x1xi32>
    %c16_i32 = arith.constant 16 : i32
    %5 = vector.broadcast %c16_i32 : i32 to vector<64x1xi32>
    %6 = arith.addi %4, %5 : vector<64x1xi32>
    %7 = tpu.iota {dimensions = array<i32: 1>} : vector<64x32xi32>
    %8 = vector.broadcast %6 : vector<64x1xi32> to vector<64x32xi32>
    %9 = arith.cmpi eq, %8, %7 : vector<64x32xi32>
    %10 = arith.extui %9 : vector<64x32xi1> to vector<64x32xi32>
    %11 = arith.sitofp %10 : vector<64x32xi32> to vector<64x32xf32>
    %c0_1 = arith.constant 0 : index
    %c0_2 = arith.constant 0 : index
    %12 = vector.load %arg2[%c0_1, %c0_2] : memref<32x128xf32, #tpu.memory_space<vmem>>, vector<32x128xf32>
    %cst = arith.constant dense<0.000000e+00> : vector<64x128xf32>
    %13 = tpu.matmul %11, %12, %cst {dimension_numbers = #tpu.dot_dimension_numbers<[1], [0], [0], [1], [0, 0, 1, 1], [], []>} : vector<64x32xf32>, vector<32x128xf32>, vector<64x128xf32> -> vector<64x128xf32>
    %c0_3 = arith.constant 0 : index
    %c0_4 = arith.constant 0 : index
    %14 = vector.load %arg3[%c0_3, %c0_4] : memref<64x128xf32, #tpu.memory_space<vmem>>, vector<64x128xf32>
    tpu.vector_store %arg3[%c0_3, %c0_4], %13 {strides = array<i32>} : memref<64x128xf32, #tpu.memory_space<vmem>>, vector<64x128xf32>,
    return
  }
  func.func @transform_0(%arg0: i32) -> (i32, i32) {
    %c0_i32 = arith.constant 0 : i32
    %c0_i32_0 = arith.constant 0 : i32
    return %arg0, %c0_i32 : i32, i32
  }
  func.func @transform_1(%arg0: i32) -> (i32, i32) {
    %c0_i32 = arith.constant 0 : i32
    %c0_i32_0 = arith.constant 0 : i32
    %c0_i32_1 = arith.constant 0 : i32
    return %c0_i32, %c0_i32_0 : i32, i32
  }
  func.func @transform_2(%arg0: i32) -> (i32, i32) {
    %c0_i32 = arith.constant 0 : i32
    %c0_i32_0 = arith.constant 0 : i32
    return %arg0, %c0_i32 : i32, i32
  }
}

</mosaic_0001>

<llo_original>
// kernel: tpu_custom_call.1
$region0: #{tpu_custom_call.1}
  #allocation0 [shape = 'u32[]', space=smem, size = 0x4, offset = 0x4, fixed_abs, tag = 'smem constant byte address 0x4 - core index']
  #allocation1 [shape = 'u32[144,128]{1,0:T(1,128)}', space=vmem, size = 0x12000, scoped, tag = 'internal scratch']
  %s0 = inlined_call_operand.vmem [shape: s32[64,1], index: 0, kind: input, shape index: {}]
  %s1 = inlined_call_operand.vmem [shape: f32[32,128], index: 1, kind: input, shape index: {}]
  %s2 = inlined_call_operand.hbm [shape: f32[64,128], index: 2, kind: output, shape index: {}]
  %s3 = sld [smem:[#allocation0]]
  $region18: #{tpu_custom_call.1} parent=0
    _
  %s5 = ssub.s32 1, %s3
  %s6 = scalar_select 0, %s5, %s3
  $region1: #{tpu_custom_call.1} parent=0
    #allocation2 [shape = 'u8[32768]{0}', space=vmem, size = 0x8000, scoped, tag = 'output window, operand 0, single buffered']
    #allocation3 [shape = 's32[1]{0}', space=sflag, size = 0x4, scoped, tag = 'scoped memory for tpu_custom_call.1']
    %7 = vsyncpa [#allocation3], 0
    // Predicated region
    $region2: #{tpu_custom_call.1} parent=1 // pred_check
      _
    $region3: #{tpu_custom_call.1} parent=1 // pred_check_branch
      %9 = sbr.rel (0) target = $region5
    $region4: #{tpu_custom_call.1} parent=1 // pred_region
      _
    $region5: #{tpu_custom_call.1} parent=1 // pred_fallthru
      _
    // Predicated region
    $region6: #{tpu_custom_call.1} parent=1 // pred_check
      _
    $region7: #{tpu_custom_call.1} parent=1 // pred_check_branch
      %11 = sbr.rel (0) target = $region9
    $region8: #{tpu_custom_call.1} parent=1 // pred_region
      _
    $region9: #{tpu_custom_call.1} parent=1 // pred_fallthru
      _
    %v12 = vld [vmem:[%s0] sm:$0xff]
    %v13 = vld [vmem:[%s0 + $0x8] sm:$0xff]
    %v14 = vld [vmem:[%s0 + $0x10] sm:$0xff]
    %v15 = vld [vmem:[%s0 + $0x18] sm:$0xff]
    %v16 = vld [vmem:[%s0 + $0x20] sm:$0xff]
    %v17 = vld [vmem:[%s0 + $0x28] sm:$0xff]
    %v18 = vld [vmem:[%s0 + $0x30] sm:$0xff]
    %v19 = vld [vmem:[%s0 + $0x38] sm:$0xff]
    %vm20 = vcmp.gt.s32.totalorder %v12, 4294967280
    %v21 = vsel %vm20, %v12, 4294967280
    %vm22 = vcmp.gt.s32.totalorder %v13, 4294967280
    %v23 = vsel %vm22, %v13, 4294967280
    %vm24 = vcmp.gt.s32.totalorder %v14, 4294967280
    %v25 = vsel %vm24, %v14, 4294967280
    %vm26 = vcmp.gt.s32.totalorder %v15, 4294967280
    %v27 = vsel %vm26, %v15, 4294967280
    %vm28 = vcmp.gt.s32.totalorder %v16, 4294967280
    %v29 = vsel %vm28, %v16, 4294967280
    %vm30 = vcmp.gt.s32.totalorder %v17, 4294967280
    %v31 = vsel %vm30, %v17, 4294967280
    %vm32 = vcmp.gt.s32.totalorder %v18, 4294967280
    %v33 = vsel %vm32, %v18, 4294967280
    %vm34 = vcmp.gt.s32.totalorder %v19, 4294967280
    %v35 = vsel %vm34, %v19, 4294967280
    %vm36 = vcmp.lt.s32.totalorder %v21, 15
    %v37 = vsel %vm36, %v21, 15
    %vm38 = vcmp.lt.s32.totalorder %v23, 15
    %v39 = vsel %vm38, %v23, 15
    %vm40 = vcmp.lt.s32.totalorder %v25, 15
    %v41 = vsel %vm40, %v25, 15
    %vm42 = vcmp.lt.s32.totalorder %v27, 15
    %v43 = vsel %vm42, %v27, 15
    %vm44 = vcmp.lt.s32.totalorder %v29, 15
    %v45 = vsel %vm44, %v29, 15
    %vm46 = vcmp.lt.s32.totalorder %v31, 15
    %v47 = vsel %vm46, %v31, 15
    %vm48 = vcmp.lt.s32.totalorder %v33, 15
    %v49 = vsel %vm48, %v33, 15
    %vm50 = vcmp.lt.s32.totalorder %v35, 15
    %v51 = vsel %vm50, %v35, 15
    %v52 = vadd.s32 %v37, 16
    %v53 = vadd.s32 %v39, 16
    %v54 = vadd.s32 %v41, 16
    %v55 = vadd.s32 %v43, 16
    %v56 = vadd.s32 %v45, 16
    %v57 = vadd.s32 %v47, 16
    %v58 = vadd.s32 %v49, 16
    %v59 = vadd.s32 %v51, 16
    %v60 = vlaneseq
    %v61 = vand.u32 %v60, 127
    %62 = vset.pattern.permute.xlu0 0
    %63 = vperm.xlu0 %62, %v52
    %v64 = vpop.permute.xlu0 %63
    %65 = vset.pattern.permute.xlu0 0
    %66 = vperm.xlu0 %65, %v53
    %v67 = vpop.permute.xlu0 %66
    %68 = vset.pattern.permute.xlu0 0
    %69 = vperm.xlu0 %68, %v54
    %v70 = vpop.permute.xlu0 %69
    %71 = vset.pattern.permute.xlu0 0
    %72 = vperm.xlu0 %71, %v55
    %v73 = vpop.permute.xlu0 %72
    %74 = vset.pattern.permute.xlu0 0
    %75 = vperm.xlu0 %74, %v56
    %v76 = vpop.permute.xlu0 %75
    %77 = vset.pattern.permute.xlu0 0
    %78 = vperm.xlu0 %77, %v57
    %v79 = vpop.permute.xlu0 %78
    %80 = vset.pattern.permute.xlu0 0
    %81 = vperm.xlu0 %80, %v58
    %v82 = vpop.permute.xlu0 %81
    %83 = vset.pattern.permute.xlu0 0
    %84 = vperm.xlu0 %83, %v59
    %v85 = vpop.permute.xlu0 %84
    %vm86 = vcmp.eq.s32.totalorder %v64, %v61
    %vm87 = vcmp.eq.s32.totalorder %v67, %v61
    %vm88 = vcmp.eq.s32.totalorder %v70, %v61
    %vm89 = vcmp.eq.s32.totalorder %v73, %v61
    %vm90 = vcmp.eq.s32.totalorder %v76, %v61
    %vm91 = vcmp.eq.s32.totalorder %v79, %v61
    %vm92 = vcmp.eq.s32.totalorder %v82, %v61
    %vm93 = vcmp.eq.s32.totalorder %v85, %v61
    %v94 = vsel %vm86, 1, 0
    %v95 = vsel %vm87, 1, 0
    %v96 = vsel %vm88, 1, 0
    %v97 = vsel %vm89, 1, 0
    %v98 = vsel %vm90, 1, 0
    %v99 = vsel %vm91, 1, 0
    %v100 = vsel %vm92, 1, 0
    %v101 = vsel %vm93, 1, 0
    %v102 = vcvt.s32.f32 %v94
    %v103 = vcvt.s32.f32 %v95
    %v104 = vcvt.s32.f32 %v96
    %v105 = vcvt.s32.f32 %v97
    %v106 = vcvt.s32.f32 %v98
    %v107 = vcvt.s32.f32 %v99
    %v108 = vcvt.s32.f32 %v100
    %v109 = vcvt.s32.f32 %v101
    %v110 = vld [vmem:[%s1] sm:$0xff]
    %v111 = vld [vmem:[%s1 + $0x8] sm:$0xff]
    %v112 = vld [vmem:[%s1 + $0x10] sm:$0xff]
    %v113 = vld [vmem:[%s1 + $0x18] sm:$0xff]
    %vm114 = vcmask 261120
    %v116 = vsel %vm114, %v102, 0
    %v119 = vsel %vm114, %v103, 0
    %v122 = vsel %vm114, %v104, 0
    %v125 = vsel %vm114, %v105, 0
    %v128 = vsel %vm114, %v106, 0
    %v131 = vsel %vm114, %v107, 0
    %v134 = vsel %vm114, %v108, 0
    %v137 = vsel %vm114, %v109, 0
    %139 = vmatprep.subr.mxu0 0.0
    %140 = vmatpush1.msra.mxu0 %v110
    %141 = vmatprep.subr.mxu0 0.0
    %142 = vmatpush1.msra.mxu0 %v111
    %143 = vmatprep.subr.mxu0 0.0
    %144 = vmatpush1.msra.mxu0 %v112
    %145 = vmatprep.subr.mxu0 0.0
    %146 = vmatpush1.msra.mxu0 %v113
    %147 = vmatprep.subr.mxu0 0.0
    %148 = vmatpush1.msra.mxu0 0.0
    %149 = vmatprep.subr.mxu0 0.0
    %150 = vmatpush1.msra.mxu0 0.0
    %151 = vmatprep.subr.mxu0 0.0
    %152 = vmatpush1.msra.mxu0 0.0
    %153 = vmatprep.subr.mxu0 0.0
    %154 = vmatpush1.msra.mxu0 0.0
    %155 = vmatprep.subr.mxu0 0.0
    %156 = vmatpush1.msra.mxu0 0.0
    %157 = vmatprep.subr.mxu0 0.0
    %158 = vmatpush1.msra.mxu0 0.0
    %159 = vmatprep.subr.mxu0 0.0
    %160 = vmatpush1.msra.mxu0 0.0
    %161 = vmatprep.subr.mxu0 0.0
    %162 = vmatpush1.msra.mxu0 0.0
    %163 = vmatprep.subr.mxu0 0.0
    %164 = vmatpush1.msra.mxu0 0.0
    %165 = vmatprep.subr.mxu0 0.0
    %166 = vmatpush1.msra.mxu0 0.0
    %167 = vmatprep.subr.mxu0 0.0
    %168 = vmatpush1.msra.mxu0 0.0
    %169 = vmatprep.subr.mxu0 0.0
    %170 = vmatpush1.msra.mxu0 0.0
    %171 = vmatprep.subr.mxu0 0.0
    %172 = vmatpush1.msra.mxu0 0.0
    %173 = vmatprep.subr.mxu0 0.0
    %174 = vmatpush1.msra.mxu0 0.0
    %175 = vmatprep.subr.mxu0 0.0
    %176 = vmatpush1.msra.mxu0 0.0
    %177 = vmatprep.subr.mxu0 0.0
    %178 = vmatpush1.msra.mxu0 0.0
    %179 = vmatprep.subr.mxu0 0.0
    %180 = vmatpush1.msra.mxu0 0.0
    %181 = vmatprep.subr.mxu0 0.0
    %182 = vmatpush1.msra.mxu0 0.0
    %183 = vmatprep.subr.mxu0 0.0
    %184 = vmatpush1.msra.mxu0 0.0
    %185 = vmatprep.subr.mxu0 0.0
    %186 = vmatpush1.msra.mxu0 0.0
    %187 = vmatprep.subr.mxu0 0.0
    %188 = vmatpush1.msra.mxu0 0.0
    %189 = vmatprep.subr.mxu0 0.0
    %190 = vmatpush1.msra.mxu0 0.0
    %191 = vmatprep.subr.mxu0 0.0
    %192 = vmatpush1.msra.mxu0 0.0
    %193 = vmatprep.subr.mxu0 0.0
    %194 = vmatpush1.msra.mxu0 0.0
    %195 = vmatprep.subr.mxu0 0.0
    %196 = vmatpush1.msra.mxu0 0.0
    %197 = vmatprep.subr.mxu0 0.0
    %198 = vmatpush1.msra.mxu0 0.0
    %199 = vmatprep.subr.mxu0 0.0
    %200 = vmatpush1.msra.mxu0 0.0
    %201 = vmatprep.subr.mxu0 0.0
    %202 = vmatpush1.msra.mxu0 0.0
    %203 = vmatprep.mubr.f32.mxu0 0.0
    %204 = vmatmul.mubr.f32.gmra.mrb[0].mxu0 %v116
    %v205 = vpop.f32.mrb[0].mxu0
    %v206 = vadd.f32 0.0, %v205
    %v207 = vpop.f32.mrb[0].mxu0
    %208 = vmatprep.mubr.f32.mxu0 0.0
    %209 = vmatmul.mubr.f32.gmra.mrb[0].mxu0 %v119
    %v210 = vpop.f32.mrb[0].mxu0
    %v211 = vadd.f32 0.0, %v210
    %v212 = vpop.f32.mrb[0].mxu0
    %213 = vmatprep.mubr.f32.mxu0 0.0
    %214 = vmatmul.mubr.f32.gmra.mrb[0].mxu0 %v122
    %v215 = vpop.f32.mrb[0].mxu0
    %v216 = vadd.f32 0.0, %v215
    %v217 = vpop.f32.mrb[0].mxu0
    %218 = vmatprep.mubr.f32.mxu0 0.0
    %219 = vmatmul.mubr.f32.gmra.mrb[0].mxu0 %v125
    %v220 = vpop.f32.mrb[0].mxu0
    %v221 = vadd.f32 0.0, %v220
    %v222 = vpop.f32.mrb[0].mxu0
    %223 = vmatprep.mubr.f32.mxu0 0.0
    %224 = vmatmul.mubr.f32.gmra.mrb[0].mxu0 %v128
    %v225 = vpop.f32.mrb[0].mxu0
    %v226 = vadd.f32 0.0, %v225
    %v227 = vpop.f32.mrb[0].mxu0
    %228 = vmatprep.mubr.f32.mxu0 0.0
    %229 = vmatmul.mubr.f32.gmra.mrb[0].mxu0 %v131
    %v230 = vpop.f32.mrb[0].mxu0
    %v231 = vadd.f32 0.0, %v230
    %v232 = vpop.f32.mrb[0].mxu0
    %233 = vmatprep.mubr.f32.mxu0 0.0
    %234 = vmatmul.mubr.f32.gmra.mrb[0].mxu0 %v134
    %v235 = vpop.f32.mrb[0].mxu0
    %v236 = vadd.f32 0.0, %v235
    %v237 = vpop.f32.mrb[0].mxu0
    %238 = vmatprep.mubr.f32.mxu0 0.0
    %239 = vmatmul.mubr.f32.gmra.mrb[0].mxu0 %v137
    %v240 = vpop.f32.mrb[0].mxu0
    %v241 = vadd.f32 0.0, %v240
    %v242 = vpop.f32.mrb[0].mxu0
    %243 = vdwg.mxu0
    %244 = vst [vmem:[#allocation2] sm:$0xff] %v206
    %245 = vst [vmem:[#allocation2 + $0x8] sm:$0xff] %v211
    %246 = vst [vmem:[#allocation2 + $0x10] sm:$0xff] %v216
    %247 = vst [vmem:[#allocation2 + $0x18] sm:$0xff] %v221
    %248 = vst [vmem:[#allocation2 + $0x20] sm:$0xff] %v226
    %249 = vst [vmem:[#allocation2 + $0x28] sm:$0xff] %v231
    %250 = vst [vmem:[#allocation2 + $0x30] sm:$0xff] %v236
    %251 = vst [vmem:[#allocation2 + $0x38] sm:$0xff] %v241
    // Predicated region
    $region10: #{tpu_custom_call.1} parent=1 // pred_check
      _
    $region11: #{tpu_custom_call.1} parent=1 // pred_check_branch
      %253 = sbr.rel (0) target = $region13
    $region12: #{tpu_custom_call.1} parent=1 // pred_region
      %s255 = ssub.s32 1024, 1024
      %256 = vsyncadd [#allocation3], %s255
      %s257 = sshll.u32 [#allocation2], 4
      %s258 = int_to_ptr.vmem [resolvable:$true] %s257
      %263 = dma.vmem_to_hbm [thread:$0]  %s258, 1024, %s2, [#allocation3], 128, 128, 8
    $region13: #{tpu_custom_call.1} parent=1 // pred_fallthru
      _
    // Predicated region
    $region14: #{tpu_custom_call.1} parent=1 // pred_check
      _
    $region15: #{tpu_custom_call.1} parent=1 // pred_check_branch
      %265 = sbr.rel (0) target = $region17
    $region16: #{tpu_custom_call.1} parent=1 // pred_region
      %266 = dma.done [#allocation3], 1024
    $region17: #{tpu_custom_call.1} parent=1 // pred_fallthru
      _
    %267 = vsyncpa [#allocation3], 1

</llo_original>
